<compile_context>
chip_gen: v5e
topology: v5e:2x2
jax: 0.10.0
libtpu: 0.0.40
codegen_flags: <defaults>
</compile_context>

<pallas_src>
import functools

import jax
import jax.numpy as jnp
from jax import lax
from jax.experimental import pallas as pl
from jax.experimental.pallas import tpu as pltpu


def _conv3x3_bn_relu(halo_ref, src, w_ref, bias_col, masks, c, hp, wp):
    """3x3 'SAME' conv as 9 per-tap MXU matmuls accumulated from a flat halo buffer.

    halo_ref : VMEM scratch; rows [0:c] used, layout [pad | hp*wp flat | pad] with
               pad = wp + 1, borders zeroed so dy-out-of-range taps read zeros.
    src      : (c, hp*wp) activation slab (cast to the halo dtype on store).
    w_ref    : (9, c_out, c) per-tap weight blocks, tap index t = ky*3 + kx
               (BN scale already folded into the weights).
    bias_col : (c_out, 1) f32 folded BN bias.
    masks    : dict dx -> bool (1, hp*wp) column-validity mask (hoisted by caller).
    """
    f32 = jnp.float32
    hpwp = hp * wp
    pad = wp + 1
    zeros = jnp.zeros((c, pad), halo_ref.dtype)
    halo_ref[0:c, pl.ds(0, pad)] = zeros                       # top zero border
    halo_ref[0:c, pl.ds(pad + hpwp, pad)] = zeros              # bottom zero border
    halo_ref[0:c, pl.ds(pad, hpwp)] = src.astype(halo_ref.dtype)

    acc = None
    for dx in (-1, 0, 1):
        grp = None
        for dy in (-1, 0, 1):
            t = (dy + 1) * 3 + (dx + 1)
            tap = halo_ref[0:c, pl.ds(pad + dy * wp + dx, hpwp)]
            d = jnp.dot(w_ref[t], tap, preferred_element_type=f32)
            grp = d if grp is None else grp + d
        if dx != 0:
            # Column masking commutes with the matmul -> one select per dx group.
            # The halo interior is fully written and the borders zeroed, so masked
            # lanes only ever discard real (finite) numbers, never stale data.
            grp = jnp.where(masks[dx], grp, 0.0)
        acc = grp if acc is None else acc + grp
    return jnp.maximum(acc + bias_col, 0.0)


def _spatial_gate(h1, halosp_ref, wsp_ref, bsp_ref, masks, hp, wp):
    """SpatialGate: ChannelPool -> 7x7 conv (BN folded) -> sigmoid; returns gated h1.

    The 7x7 conv over the 2 pooled channels is a VPU accumulation of 49
    scalar-weighted shifted slices (scalars read from SMEM), grouped by dx so each
    of the 6 edge masks is applied exactly once.
    """
    f32 = jnp.float32
    hpwp = hp * wp
    pad = 3 * (wp + 1)
    cmax = jnp.max(h1, axis=0, keepdims=True)                  # (1, hpwp) f32
    cmean = jnp.mean(h1, axis=0, keepdims=True)                # (1, hpwp) f32
    zeros = jnp.zeros((2, pad), f32)
    halosp_ref[:, pl.ds(0, pad)] = zeros
    halosp_ref[:, pl.ds(pad + hpwp, pad)] = zeros
    halosp_ref[0:1, pl.ds(pad, hpwp)] = cmax
    halosp_ref[1:2, pl.ds(pad, hpwp)] = cmean

    z = None
    for dx in range(-3, 4):
        grp = None
        for dy in range(-3, 4):
            k = (dy + 3) * 7 + (dx + 3)
            off = pad + dy * wp + dx
            tmax = halosp_ref[0:1, pl.ds(off, hpwp)]
            tmean = halosp_ref[1:2, pl.ds(off, hpwp)]
            g = wsp_ref[0, k] * tmax + wsp_ref[1, k] * tmean
            grp = g if grp is None else grp + g
        if dx != 0:
            grp = jnp.where(masks[dx], grp, 0.0)
        z = grp if z is None else z + grp
    z = z + bsp_ref[0, 0]
    gate = pl.reciprocal(1.0 + jnp.exp(-z), approx=True)       # sigmoid on the EUP
    return h1 * gate


def _down_kernel(x_ref, w1_ref, b1_ref, w2_ref, b2_ref, *rest,
                 attention, c_in, c_mid, hp, wp):
    if attention:
        wsp_ref, bsp_ref, out_ref, halo, halosp = rest
    else:
        out_ref, halo = rest

    hpwp = hp * wp

    # Hoisted column-validity masks: one bool (1, hpwp) per distinct |dx| (computed
    # once per grid step, shared by both conv stages and the 7x7 gate).
    xcol = lax.broadcasted_iota(jnp.int32, (1, hpwp), 1) % wp
    masks = {}
    for d in ((1, 2, 3) if attention else (1,)):
        masks[-d] = xcol >= d
        masks[d] = xcol < (wp - d)

    # ---- stage 0: 2x2 max-pool (the 4 window taps pre-arranged on a leading axis) ----
    pooled = jnp.maximum(jnp.maximum(x_ref[0, 0], x_ref[0, 1]),
                         jnp.maximum(x_ref[0, 2], x_ref[0, 3]))      # (c_in, hpwp)

    # ---- stage 1: conv3x3 (c_in -> c_mid) + BN + ReLU ----
    h1 = _conv3x3_bn_relu(halo, pooled, w1_ref, b1_ref[...], masks, c_in, hp, wp)

    # ---- stage 2 (optional): SpatialGate ----
    if attention:
        h1 = _spatial_gate(h1, halosp, wsp_ref, bsp_ref, masks, hp, wp)

    # ---- stage 3: conv3x3 (c_mid -> c_out) + BN + ReLU (halo scratch reused) ----
    out = _conv3x3_bn_relu(halo, h1, w2_ref, b2_ref[...], masks, c_mid, hp, wp)
    out_ref[0] = out.astype(out_ref.dtype)                           # single dense store


def down_pallas(x, params, attention=False, *, conv_dtype=jnp.bfloat16,
                vmem_limit_bytes=32 * 1024 * 1024):
    """x: (N, C_in, H, W) float32 (NCHW). Returns (N, C_out, H/2, W/2) float32."""
    N, c_in, H, W = x.shape
    hp, wp = H // 2, W // 2
    hpwp = hp * wp
    w1, (s1, b1) = params["w1"], params["bn1"]
    w2, (s2, b2) = params["w2"], params["bn2"]
    c_mid, c_out = w1.shape[0], w2.shape[0]

    # layout glue: 2x2 pooling window -> leading axis of 4, spatial flattened
    # (lane-dense).  TODO(synk): extra HBM pass; see header note.
    x4 = x.reshape(N, c_in, hp, 2, wp, 2).transpose(0, 3, 5, 1, 2, 4)
    x4 = x4.reshape(N, 4, c_in, hpwp).astype(conv_dtype)

    # per-tap weight blocks (t = ky*3 + kx) with the BN scale folded in.
    def fold3x3(w, s):
        wt = jnp.transpose(w, (2, 3, 0, 1)).reshape(9, w.shape[0], w.shape[1])
        return (wt * s[None, :, None]).astype(conv_dtype)

    w1t, w2t = fold3x3(w1, s1), fold3x3(w2, s2)
    b1c = b1.reshape(c_mid, 1).astype(jnp.float32)
    b2c = b2.reshape(c_out, 1).astype(jnp.float32)

    inputs = [x4, w1t, b1c, w2t, b2c]
    in_specs = [
        pl.BlockSpec((1, 4, c_in, hpwp), lambda n: (n, 0, 0, 0)),
        # constant-index blocks: Pallas keeps them resident across grid steps.
        pl.BlockSpec((9, c_mid, c_in), lambda n: (0, 0, 0)),
        pl.BlockSpec((c_mid, 1), lambda n: (0, 0)),
        pl.BlockSpec((9, c_out, c_mid), lambda n: (0, 0, 0)),
        pl.BlockSpec((c_out, 1), lambda n: (0, 0)),
    ]
    # One halo buffer shared by both conv stages (disjoint lifetimes -> peak = max);
    # no im2col patch buffers at all.
    scratch = [pltpu.VMEM((max(c_in, c_mid), hpwp + 2 * (wp + 1)), conv_dtype)]
    if attention:
        wsp, (ssp, bsp) = params["wsp"], params["bnsp"]
        wspf = (wsp[0].reshape(2, 49) * ssp[0]).astype(jnp.float32)   # BN scale folded
        bspf = bsp.reshape(1, 1).astype(jnp.float32)
        inputs += [wspf, bspf]
        in_specs += [pl.BlockSpec(memory_space=pltpu.MemorySpace.SMEM),
                     pl.BlockSpec(memory_space=pltpu.MemorySpace.SMEM)]
        scratch += [pltpu.VMEM((2, hpwp + 6 * (wp + 1)), jnp.float32)]

    kernel = functools.partial(_down_kernel, attention=attention,
                               c_in=c_in, c_mid=c_mid, hp=hp, wp=wp)
    y = pl.pallas_call(
        kernel,
        out_shape=jax.ShapeDtypeStruct((N, c_out, hpwp), jnp.float32),
        grid=(N,),
        in_specs=in_specs,
        out_specs=pl.BlockSpec((1, c_out, hpwp), lambda n: (n, 0, 0)),
        scratch_shapes=scratch,
        compiler_params=pltpu.CompilerParams(
            dimension_semantics=("parallel",),
            # Re-derive per generation: keep 2x-buffered input block + output block +
            # scratch under ~48-56 MiB on v7x; can be raised toward ~100 MiB on v5e/v6e.
            vmem_limit_bytes=vmem_limit_bytes),
    )(*inputs)
    return y.reshape(N, c_out, hp, wp)


def down_reference(x, params, attention):
    """Pure-JAX reference mirroring the PyTorch eval-mode forward."""
    N, C, H, W = x.shape
    dn = ("NCHW", "OIHW", "NCHW")
    prec = lax.Precision.HIGHEST
    y = x.reshape(N, C, H // 2, 2, W // 2, 2).max(axis=(3, 5))          # MaxPool2d(2)
    s1, b1 = params["bn1"]
    y = lax.conv_general_dilated(y, params["w1"], (1, 1), "SAME",
                                 dimension_numbers=dn, precision=prec)
    y = jnp.maximum(y * s1[None, :, None, None] + b1[None, :, None, None], 0.0)
    if attention:
        cp = jnp.concatenate([y.max(axis=1, keepdims=True),
                              y.mean(axis=1, keepdims=True)], axis=1)
        z = lax.conv_general_dilated(cp, params["wsp"], (1, 1), "SAME",
                                     dimension_numbers=dn, precision=prec)
        ssp, bsp = params["bnsp"]
        y = y * jax.nn.sigmoid(z * ssp + bsp)
    s2, b2 = params["bn2"]
    y = lax.conv_general_dilated(y, params["w2"], (1, 1), "SAME",
                                 dimension_numbers=dn, precision=prec)
    return jnp.maximum(y * s2[None, :, None, None] + b2[None, :, None, None], 0.0)


def _bn_raw(k, c):
    k1, k2, k3, k4 = jax.random.split(k, 4)
    gamma = 1.0 + 0.1 * jax.random.normal(k1, (c,), jnp.float32)
    beta = 0.1 * jax.random.normal(k2, (c,), jnp.float32)
    rm = 0.1 * jax.random.normal(k3, (c,), jnp.float32)
    rv = 0.5 + 0.5 * jnp.abs(jax.random.normal(k4, (c,), jnp.float32))
    return gamma, beta, rm, rv


def _fold_bn(gamma, beta, rm, rv, eps=1e-5):
    s = gamma / jnp.sqrt(rv + eps)
    return s, beta - rm * s


if __name__ == "__main__":
    N, C_in, C_out, H, W = 2, 4, 8, 16, 16
    key = jax.random.PRNGKey(0)
    ks = jax.random.split(key, 9)

    x = jax.random.normal(ks[0], (N, C_in, H, W), jnp.float32)

    # Deterministic synthetic parameters with the PyTorch module's shapes.
    w1 = 0.2 * jax.random.normal(ks[1], (C_out, C_in, 3, 3), jnp.float32)   # conv1 (bias=False)
    w2 = 0.2 * jax.random.normal(ks[2], (C_out, C_out, 3, 3), jnp.float32)  # conv2 (bias=False)
    wsp = 0.2 * jax.random.normal(ks[3], (1, 2, 7, 7), jnp.float32)         # SpatialGate conv
    bsp_conv = 0.1 * jax.random.normal(ks[4], (1,), jnp.float32)            # its bias

    s1, b1 = _fold_bn(*_bn_raw(ks[5], C_out))
    s2, b2 = _fold_bn(*_bn_raw(ks[6], C_out))
    gs, bes, rms, rvs = _bn_raw(ks[7], 1)
    ssp = gs / jnp.sqrt(rvs + 1e-5)
    bsp = bes + (bsp_conv - rms) * ssp   # conv bias folded through BatchNorm2d(1)

    params = {"w1": w1, "bn1": (s1, b1), "w2": w2, "bn2": (s2, b2),
              "wsp": wsp, "bnsp": (ssp, bsp)}

    for attention in (False, True):
        ref = down_reference(x, params, attention)
        # f32 path is numerically tight (approx-reciprocal sigmoid only); the bf16
        # MXU path is a deliberate precision/perf trade, checked at a looser tol.
        for dtype, tol in ((jnp.float32, 1e-2), (jnp.bfloat16, 3e-2)):
            out = jax.block_until_ready(
                down_pallas(x, params, attention=attention, conv_dtype=dtype))
            assert out.shape == (N, C_out, H // 2, W // 2)
            err = jnp.max(jnp.abs(out - ref))
            assert jnp.allclose(out, ref, atol=tol, rtol=tol), \
                f"mismatch (attention={attention}, dtype={dtype.__name__}): max abs err {err}"
    print("KERNEL_OK")
</pallas_src>

<mosaic_0001>
module attributes {stable_mosaic.version = 11 : i64} {
  func.func @_down_kernel(%arg0: i32, %arg1: memref<1x4x4x64xf32, #tpu.memory_space<vmem>>, %arg2: memref<9x8x4xf32, #tpu.memory_space<vmem>>, %arg3: memref<8x1xf32, #tpu.memory_space<vmem>>, %arg4: memref<9x8x8xf32, #tpu.memory_space<vmem>>, %arg5: memref<8x1xf32, #tpu.memory_space<vmem>>, %arg6: memref<1x8x64xf32, #tpu.memory_space<vmem>>, %arg7: memref<8x82xf32, #tpu.memory_space<vmem>>) attributes {dimension_semantics = [#tpu.dimension_semantics<parallel>], iteration_bounds = array<i64: 2>, scalar_prefetch = 0 : i64, scratch_operands = 1 : i64, tpu.core_type = #tpu.core_type<tc>, window_params = [{transform_indices = @transform_0, window_bounds = array<i64: 1, 4, 4, 64>}, {pipeline_mode = #tpu.pipeline_mode<synchronous>, transform_indices = @transform_1, window_bounds = array<i64: 9, 8, 4>}, {pipeline_mode = #tpu.pipeline_mode<synchronous>, transform_indices = @transform_2, window_bounds = array<i64: 8, 1>}, {pipeline_mode = #tpu.pipeline_mode<synchronous>, transform_indices = @transform_3, window_bounds = array<i64: 9, 8, 8>}, {pipeline_mode = #tpu.pipeline_mode<synchronous>, transform_indices = @transform_4, window_bounds = array<i64: 8, 1>}, {transform_indices = @transform_5, window_bounds = array<i64: 1, 8, 64>}]} {
    %0 = tpu.iota {dimensions = array<i32: 1>} : vector<1x64xi32>
    %c8_i32 = arith.constant 8 : i32
    %c0_i32 = arith.constant 0 : i32
    %1 = arith.cmpi eq, %c8_i32, %c0_i32 : i32
    %c1_i32 = arith.constant 1 : i32
    %2 = arith.select %1, %c1_i32, %c8_i32 : i32
    %3 = vector.broadcast %2 : i32 to vector<1x64xi32>
    %4 = arith.remsi %0, %3 : vector<1x64xi32>
    %c0_i32_0 = arith.constant 0 : i32
    %5 = vector.broadcast %c0_i32_0 : i32 to vector<1x64xi32>
    %6 = arith.cmpi ne, %4, %5 : vector<1x64xi32>
    %c0_i32_1 = arith.constant 0 : i32
    %7 = vector.broadcast %c0_i32_1 : i32 to vector<1x64xi32>
    %8 = arith.cmpi slt, %4, %7 : vector<1x64xi32>
    %c0_i32_2 = arith.constant 0 : i32
    %9 = arith.cmpi slt, %2, %c0_i32_2 : i32
    %10 = vector.broadcast %9 : i1 to vector<1x64xi1>
    %11 = vector.broadcast %10 : vector<1x64xi1> to vector<1x64xi1>
    %12 = arith.xori %8, %11 : vector<1x64xi1>
    %13 = arith.andi %12, %6 : vector<1x64xi1>
    %14 = vector.broadcast %2 : i32 to vector<1x64xi32>
    %15 = arith.addi %4, %14 : vector<1x64xi32>
    %16 = arith.select %13, %15, %4 : vector<1x64xi1>, vector<1x64xi32>
    %c1_i32_3 = arith.constant 1 : i32
    %17 = vector.broadcast %c1_i32_3 : i32 to vector<1x64xi32>
    %18 = arith.cmpi sge, %16, %17 : vector<1x64xi32>
    %c7_i32 = arith.constant 7 : i32
    %19 = vector.broadcast %c7_i32 : i32 to vector<1x64xi32>
    %20 = arith.cmpi slt, %16, %19 : vector<1x64xi32>
    %c0 = arith.constant 0 : index
    %c0_4 = arith.constant 0 : index
    %c0_5 = arith.constant 0 : index
    %c0_6 = arith.constant 0 : index
    %21 = vector.load %arg1[%c0, %c0_4, %c0_5, %c0_6] : memref<1x4x4x64xf32, #tpu.memory_space<vmem>>, vector<1x1x4x64xf32>
    %22 = vector.shape_cast %21 : vector<1x1x4x64xf32> to vector<4x64xf32>
    %c0_7 = arith.constant 0 : index
    %c1 = arith.constant 1 : index
    %c0_8 = arith.constant 0 : index
    %c0_9 = arith.constant 0 : index
    %23 = vector.load %arg1[%c0_7, %c1, %c0_8, %c0_9] : memref<1x4x4x64xf32, #tpu.memory_space<vmem>>, vector<1x1x4x64xf32>
    %24 = vector.shape_cast %23 : vector<1x1x4x64xf32> to vector<4x64xf32>
    %25 = arith.maximumf %22, %24 : vector<4x64xf32>
    %c0_10 = arith.constant 0 : index
    %c2 = arith.constant 2 : index
    %c0_11 = arith.constant 0 : index
    %c0_12 = arith.constant 0 : index
    %26 = vector.load %arg1[%c0_10, %c2, %c0_11, %c0_12] : memref<1x4x4x64xf32, #tpu.memory_space<vmem>>, vector<1x1x4x64xf32>
    %27 = vector.shape_cast %26 : vector<1x1x4x64xf32> to vector<4x64xf32>
    %c0_13 = arith.constant 0 : index
    %c3 = arith.constant 3 : index
    %c0_14 = arith.constant 0 : index
    %c0_15 = arith.constant 0 : index
    %28 = vector.load %arg1[%c0_13, %c3, %c0_14, %c0_15] : memref<1x4x4x64xf32, #tpu.memory_space<vmem>>, vector<1x1x4x64xf32>
    %29 = vector.shape_cast %28 : vector<1x1x4x64xf32> to vector<4x64xf32>
    %30 = arith.maximumf %27, %29 : vector<4x64xf32>
    %31 = arith.maximumf %25, %30 : vector<4x64xf32>
    %c0_16 = arith.constant 0 : index
    %c0_17 = arith.constant 0 : index
    %32 = vector.load %arg3[%c0_16, %c0_17] : memref<8x1xf32, #tpu.memory_space<vmem>>, vector<8x1xf32>
    %cst = arith.constant 0.000000e+00 : f32
    %33 = vector.broadcast %cst : f32 to vector<4x9xf32>
    %c0_18 = arith.constant 0 : index
    %c0_19 = arith.constant 0 : index
    %34 = vector.load %arg7[%c0_18, %c0_19] : memref<8x82xf32, #tpu.memory_space<vmem>>, vector<4x9xf32>
    tpu.vector_store %arg7[%c0_18, %c0_19], %33 {strides = array<i32>} : memref<8x82xf32, #tpu.memory_space<vmem>>, vector<4x9xf32>,
    %c0_20 = arith.constant 0 : index
    %c73 = arith.constant 73 : index
    %35 = vector.load %arg7[%c0_20, %c73] : memref<8x82xf32, #tpu.memory_space<vmem>>, vector<4x9xf32>
    tpu.vector_store %arg7[%c0_20, %c73], %33 {strides = array<i32>} : memref<8x82xf32, #tpu.memory_space<vmem>>, vector<4x9xf32>,
    %c0_21 = arith.constant 0 : index
    %c9 = arith.constant 9 : index
    %36 = vector.load %arg7[%c0_21, %c9] : memref<8x82xf32, #tpu.memory_space<vmem>>, vector<4x64xf32>
    tpu.vector_store %arg7[%c0_21, %c9], %31 {strides = array<i32>} : memref<8x82xf32, #tpu.memory_space<vmem>>, vector<4x64xf32>,
    %c0_22 = arith.constant 0 : index
    %c0_23 = arith.constant 0 : index
    %37 = vector.load %arg7[%c0_22, %c0_23] : memref<8x82xf32, #tpu.memory_space<vmem>>, vector<4x64xf32>
    %c0_24 = arith.constant 0 : index
    %c0_25 = arith.constant 0 : index
    %c0_26 = arith.constant 0 : index
    %38 = vector.load %arg2[%c0_24, %c0_25, %c0_26] : memref<9x8x4xf32, #tpu.memory_space<vmem>>, vector<1x8x4xf32>
    %39 = vector.shape_cast %38 : vector<1x8x4xf32> to vector<8x4xf32>
    %cst_27 = arith.constant dense<0.000000e+00> : vector<8x64xf32>
    %40 = tpu.matmul %39, %37, %cst_27 {dimension_numbers = #tpu.dot_dimension_numbers<[1], [0], [0], [1], [0, 0, 1, 1], [], []>} : vector<8x4xf32>, vector<4x64xf32>, vector<8x64xf32> -> vector<8x64xf32>
    %c0_28 = arith.constant 0 : index
    %c8 = arith.constant 8 : index
    %41 = vector.load %arg7[%c0_28, %c8] : memref<8x82xf32, #tpu.memory_space<vmem>>, vector<4x64xf32>
    %c3_29 = arith.constant 3 : index
    %c0_30 = arith.constant 0 : index
    %c0_31 = arith.constant 0 : index
    %42 = vector.load %arg2[%c3_29, %c0_30, %c0_31] : memref<9x8x4xf32, #tpu.memory_space<vmem>>, vector<1x8x4xf32>
    %43 = vector.shape_cast %42 : vector<1x8x4xf32> to vector<8x4xf32>
    %cst_32 = arith.constant dense<0.000000e+00> : vector<8x64xf32>
    %44 = tpu.matmul %43, %41, %cst_32 {dimension_numbers = #tpu.dot_dimension_numbers<[1], [0], [0], [1], [0, 0, 1, 1], [], []>} : vector<8x4xf32>, vector<4x64xf32>, vector<8x64xf32> -> vector<8x64xf32>
    %45 = arith.addf %40, %44 : vector<8x64xf32>
    %c0_33 = arith.constant 0 : index
    %c16 = arith.constant 16 : index
    %46 = vector.load %arg7[%c0_33, %c16] : memref<8x82xf32, #tpu.memory_space<vmem>>, vector<4x64xf32>
    %c6 = arith.constant 6 : index
    %c0_34 = arith.constant 0 : index
    %c0_35 = arith.constant 0 : index
    %47 = vector.load %arg2[%c6, %c0_34, %c0_35] : memref<9x8x4xf32, #tpu.memory_space<vmem>>, vector<1x8x4xf32>
    %48 = vector.shape_cast %47 : vector<1x8x4xf32> to vector<8x4xf32>
    %cst_36 = arith.constant dense<0.000000e+00> : vector<8x64xf32>
    %49 = tpu.matmul %48, %46, %cst_36 {dimension_numbers = #tpu.dot_dimension_numbers<[1], [0], [0], [1], [0, 0, 1, 1], [], []>} : vector<8x4xf32>, vector<4x64xf32>, vector<8x64xf32> -> vector<8x64xf32>
    %50 = arith.addf %45, %49 : vector<8x64xf32>
    %cst_37 = arith.constant 0.000000e+00 : f32
    %51 = vector.shape_cast %18 : vector<1x64xi1> to vector<1x64xi1>
    %52 = vector.broadcast %51 : vector<1x64xi1> to vector<8x64xi1>
    %53 = vector.broadcast %cst_37 : f32 to vector<8x64xf32>
    %54 = arith.select %52, %50, %53 : vector<8x64xi1>, vector<8x64xf32>
    %c0_38 = arith.constant 0 : index
    %c1_39 = arith.constant 1 : index
    %55 = vector.load %arg7[%c0_38, %c1_39] : memref<8x82xf32, #tpu.memory_space<vmem>>, vector<4x64xf32>
    %c1_40 = arith.constant 1 : index
    %c0_41 = arith.constant 0 : index
    %c0_42 = arith.constant 0 : index
    %56 = vector.load %arg2[%c1_40, %c0_41, %c0_42] : memref<9x8x4xf32, #tpu.memory_space<vmem>>, vector<1x8x4xf32>
    %57 = vector.shape_cast %56 : vector<1x8x4xf32> to vector<8x4xf32>
    %cst_43 = arith.constant dense<0.000000e+00> : vector<8x64xf32>
    %58 = tpu.matmul %57, %55, %cst_43 {dimension_numbers = #tpu.dot_dimension_numbers<[1], [0], [0], [1], [0, 0, 1, 1], [], []>} : vector<8x4xf32>, vector<4x64xf32>, vector<8x64xf32> -> vector<8x64xf32>
    %c0_44 = arith.constant 0 : index
    %c9_45 = arith.constant 9 : index
    %59 = vector.load %arg7[%c0_44, %c9_45] : memref<8x82xf32, #tpu.memory_space<vmem>>, vector<4x64xf32>
    %c4 = arith.constant 4 : index
    %c0_46 = arith.constant 0 : index
    %c0_47 = arith.constant 0 : index
    %60 = vector.load %arg2[%c4, %c0_46, %c0_47] : memref<9x8x4xf32, #tpu.memory_space<vmem>>, vector<1x8x4xf32>
    %61 = vector.shape_cast %60 : vector<1x8x4xf32> to vector<8x4xf32>
    %cst_48 = arith.constant dense<0.000000e+00> : vector<8x64xf32>
    %62 = tpu.matmul %61, %59, %cst_48 {dimension_numbers = #tpu.dot_dimension_numbers<[1], [0], [0], [1], [0, 0, 1, 1], [], []>} : vector<8x4xf32>, vector<4x64xf32>, vector<8x64xf32> -> vector<8x64xf32>
    %63 = arith.addf %58, %62 : vector<8x64xf32>
    %c0_49 = arith.constant 0 : index
    %c17 = arith.constant 17 : index
    %64 = vector.load %arg7[%c0_49, %c17] : memref<8x82xf32, #tpu.memory_space<vmem>>, vector<4x64xf32>
    %c7 = arith.constant 7 : index
    %c0_50 = arith.constant 0 : index
    %c0_51 = arith.constant 0 : index
    %65 = vector.load %arg2[%c7, %c0_50, %c0_51] : memref<9x8x4xf32, #tpu.memory_space<vmem>>, vector<1x8x4xf32>
    %66 = vector.shape_cast %65 : vector<1x8x4xf32> to vector<8x4xf32>
    %cst_52 = arith.constant dense<0.000000e+00> : vector<8x64xf32>
    %67 = tpu.matmul %66, %64, %cst_52 {dimension_numbers = #tpu.dot_dimension_numbers<[1], [0], [0], [1], [0, 0, 1, 1], [], []>} : vector<8x4xf32>, vector<4x64xf32>, vector<8x64xf32> -> vector<8x64xf32>
    %68 = arith.addf %63, %67 : vector<8x64xf32>
    %69 = arith.addf %54, %68 : vector<8x64xf32>
    %c0_53 = arith.constant 0 : index
    %c2_54 = arith.constant 2 : index
    %70 = vector.load %arg7[%c0_53, %c2_54] : memref<8x82xf32, #tpu.memory_space<vmem>>, vector<4x64xf32>
    %c2_55 = arith.constant 2 : index
    %c0_56 = arith.constant 0 : index
    %c0_57 = arith.constant 0 : index
    %71 = vector.load %arg2[%c2_55, %c0_56, %c0_57] : memref<9x8x4xf32, #tpu.memory_space<vmem>>, vector<1x8x4xf32>
    %72 = vector.shape_cast %71 : vector<1x8x4xf32> to vector<8x4xf32>
    %cst_58 = arith.constant dense<0.000000e+00> : vector<8x64xf32>
    %73 = tpu.matmul %72, %70, %cst_58 {dimension_numbers = #tpu.dot_dimension_numbers<[1], [0], [0], [1], [0, 0, 1, 1], [], []>} : vector<8x4xf32>, vector<4x64xf32>, vector<8x64xf32> -> vector<8x64xf32>
    %c0_59 = arith.constant 0 : index
    %c10 = arith.constant 10 : index
    %74 = vector.load %arg7[%c0_59, %c10] : memref<8x82xf32, #tpu.memory_space<vmem>>, vector<4x64xf32>
    %c5 = arith.constant 5 : index
    %c0_60 = arith.constant 0 : index
    %c0_61 = arith.constant 0 : index
    %75 = vector.load %arg2[%c5, %c0_60, %c0_61] : memref<9x8x4xf32, #tpu.memory_space<vmem>>, vector<1x8x4xf32>
    %76 = vector.shape_cast %75 : vector<1x8x4xf32> to vector<8x4xf32>
    %cst_62 = arith.constant dense<0.000000e+00> : vector<8x64xf32>
    %77 = tpu.matmul %76, %74, %cst_62 {dimension_numbers = #tpu.dot_dimension_numbers<[1], [0], [0], [1], [0, 0, 1, 1], [], []>} : vector<8x4xf32>, vector<4x64xf32>, vector<8x64xf32> -> vector<8x64xf32>
    %78 = arith.addf %73, %77 : vector<8x64xf32>
    %c0_63 = arith.constant 0 : index
    %c18 = arith.constant 18 : index
    %79 = vector.load %arg7[%c0_63, %c18] : memref<8x82xf32, #tpu.memory_space<vmem>>, vector<4x64xf32>
    %c8_64 = arith.constant 8 : index
    %c0_65 = arith.constant 0 : index
    %c0_66 = arith.constant 0 : index
    %80 = vector.load %arg2[%c8_64, %c0_65, %c0_66] : memref<9x8x4xf32, #tpu.memory_space<vmem>>, vector<1x8x4xf32>
    %81 = vector.shape_cast %80 : vector<1x8x4xf32> to vector<8x4xf32>
    %cst_67 = arith.constant dense<0.000000e+00> : vector<8x64xf32>
    %82 = tpu.matmul %81, %79, %cst_67 {dimension_numbers = #tpu.dot_dimension_numbers<[1], [0], [0], [1], [0, 0, 1, 1], [], []>} : vector<8x4xf32>, vector<4x64xf32>, vector<8x64xf32> -> vector<8x64xf32>
    %83 = arith.addf %78, %82 : vector<8x64xf32>
    %cst_68 = arith.constant 0.000000e+00 : f32
    %84 = vector.shape_cast %20 : vector<1x64xi1> to vector<1x64xi1>
    %85 = vector.broadcast %84 : vector<1x64xi1> to vector<8x64xi1>
    %86 = vector.broadcast %cst_68 : f32 to vector<8x64xf32>
    %87 = arith.select %85, %83, %86 : vector<8x64xi1>, vector<8x64xf32>
    %88 = arith.addf %69, %87 : vector<8x64xf32>
    %89 = vector.broadcast %32 : vector<8x1xf32> to vector<8x64xf32>
    %90 = arith.addf %88, %89 : vector<8x64xf32>
    %cst_69 = arith.constant 0.000000e+00 : f32
    %91 = vector.broadcast %cst_69 : f32 to vector<8x64xf32>
    %92 = arith.maximumf %90, %91 : vector<8x64xf32>
    %c0_70 = arith.constant 0 : index
    %c0_71 = arith.constant 0 : index
    %93 = vector.load %arg5[%c0_70, %c0_71] : memref<8x1xf32, #tpu.memory_space<vmem>>, vector<8x1xf32>
    %cst_72 = arith.constant 0.000000e+00 : f32
    %94 = vector.broadcast %cst_72 : f32 to vector<8x9xf32>
    %c0_73 = arith.constant 0 : index
    %c0_74 = arith.constant 0 : index
    %95 = vector.load %arg7[%c0_73, %c0_74] : memref<8x82xf32, #tpu.memory_space<vmem>>, vector<8x9xf32>
    tpu.vector_store %arg7[%c0_73, %c0_74], %94 {strides = array<i32>} : memref<8x82xf32, #tpu.memory_space<vmem>>, vector<8x9xf32>,
    %c0_75 = arith.constant 0 : index
    %c73_76 = arith.constant 73 : index
    %96 = vector.load %arg7[%c0_75, %c73_76] : memref<8x82xf32, #tpu.memory_space<vmem>>, vector<8x9xf32>
    tpu.vector_store %arg7[%c0_75, %c73_76], %94 {strides = array<i32>} : memref<8x82xf32, #tpu.memory_space<vmem>>, vector<8x9xf32>,
    %c0_77 = arith.constant 0 : index
    %c9_78 = arith.constant 9 : index
    %97 = vector.load %arg7[%c0_77, %c9_78] : memref<8x82xf32, #tpu.memory_space<vmem>>, vector<8x64xf32>
    tpu.vector_store %arg7[%c0_77, %c9_78], %92 {strides = array<i32>} : memref<8x82xf32, #tpu.memory_space<vmem>>, vector<8x64xf32>,
    %c0_79 = arith.constant 0 : index
    %c0_80 = arith.constant 0 : index
    %98 = vector.load %arg7[%c0_79, %c0_80] : memref<8x82xf32, #tpu.memory_space<vmem>>, vector<8x64xf32>
    %c0_81 = arith.constant 0 : index
    %c0_82 = arith.constant 0 : index
    %c0_83 = arith.constant 0 : index
    %99 = vector.load %arg4[%c0_81, %c0_82, %c0_83] : memref<9x8x8xf32, #tpu.memory_space<vmem>>, vector<1x8x8xf32>
    %100 = vector.shape_cast %99 : vector<1x8x8xf32> to vector<8x8xf32>
    %cst_84 = arith.constant dense<0.000000e+00> : vector<8x64xf32>
    %101 = tpu.matmul %100, %98, %cst_84 {dimension_numbers = #tpu.dot_dimension_numbers<[1], [0], [0], [1], [0, 0, 1, 1], [], []>} : vector<8x8xf32>, vector<8x64xf32>, vector<8x64xf32> -> vector<8x64xf32>
    %c0_85 = arith.constant 0 : index
    %c8_86 = arith.constant 8 : index
    %102 = vector.load %arg7[%c0_85, %c8_86] : memref<8x82xf32, #tpu.memory_space<vmem>>, vector<8x64xf32>
    %c3_87 = arith.constant 3 : index
    %c0_88 = arith.constant 0 : index
    %c0_89 = arith.constant 0 : index
    %103 = vector.load %arg4[%c3_87, %c0_88, %c0_89] : memref<9x8x8xf32, #tpu.memory_space<vmem>>, vector<1x8x8xf32>
    %104 = vector.shape_cast %103 : vector<1x8x8xf32> to vector<8x8xf32>
    %cst_90 = arith.constant dense<0.000000e+00> : vector<8x64xf32>
    %105 = tpu.matmul %104, %102, %cst_90 {dimension_numbers = #tpu.dot_dimension_numbers<[1], [0], [0], [1], [0, 0, 1, 1], [], []>} : vector<8x8xf32>, vector<8x64xf32>, vector<8x64xf32> -> vector<8x64xf32>
    %106 = arith.addf %101, %105 : vector<8x64xf32>
    %c0_91 = arith.constant 0 : index
    %c16_92 = arith.constant 16 : index
    %107 = vector.load %arg7[%c0_91, %c16_92] : memref<8x82xf32, #tpu.memory_space<vmem>>, vector<8x64xf32>
    %c6_93 = arith.constant 6 : index
    %c0_94 = arith.constant 0 : index
    %c0_95 = arith.constant 0 : index
    %108 = vector.load %arg4[%c6_93, %c0_94, %c0_95] : memref<9x8x8xf32, #tpu.memory_space<vmem>>, vector<1x8x8xf32>
    %109 = vector.shape_cast %108 : vector<1x8x8xf32> to vector<8x8xf32>
    %cst_96 = arith.constant dense<0.000000e+00> : vector<8x64xf32>
    %110 = tpu.matmul %109, %107, %cst_96 {dimension_numbers = #tpu.dot_dimension_numbers<[1], [0], [0], [1], [0, 0, 1, 1], [], []>} : vector<8x8xf32>, vector<8x64xf32>, vector<8x64xf32> -> vector<8x64xf32>
    %111 = arith.addf %106, %110 : vector<8x64xf32>
    %cst_97 = arith.constant 0.000000e+00 : f32
    %112 = vector.shape_cast %18 : vector<1x64xi1> to vector<1x64xi1>
    %113 = vector.broadcast %112 : vector<1x64xi1> to vector<8x64xi1>
    %114 = vector.broadcast %cst_97 : f32 to vector<8x64xf32>
    %115 = arith.select %113, %111, %114 : vector<8x64xi1>, vector<8x64xf32>
    %c0_98 = arith.constant 0 : index
    %c1_99 = arith.constant 1 : index
    %116 = vector.load %arg7[%c0_98, %c1_99] : memref<8x82xf32, #tpu.memory_space<vmem>>, vector<8x64xf32>
    %c1_100 = arith.constant 1 : index
    %c0_101 = arith.constant 0 : index
    %c0_102 = arith.constant 0 : index
    %117 = vector.load %arg4[%c1_100, %c0_101, %c0_102] : memref<9x8x8xf32, #tpu.memory_space<vmem>>, vector<1x8x8xf32>
    %118 = vector.shape_cast %117 : vector<1x8x8xf32> to vector<8x8xf32>
    %cst_103 = arith.constant dense<0.000000e+00> : vector<8x64xf32>
    %119 = tpu.matmul %118, %116, %cst_103 {dimension_numbers = #tpu.dot_dimension_numbers<[1], [0], [0], [1], [0, 0, 1, 1], [], []>} : vector<8x8xf32>, vector<8x64xf32>, vector<8x64xf32> -> vector<8x64xf32>
    %c0_104 = arith.constant 0 : index
    %c9_105 = arith.constant 9 : index
    %120 = vector.load %arg7[%c0_104, %c9_105] : memref<8x82xf32, #tpu.memory_space<vmem>>, vector<8x64xf32>
    %c4_106 = arith.constant 4 : index
    %c0_107 = arith.constant 0 : index
    %c0_108 = arith.constant 0 : index
    %121 = vector.load %arg4[%c4_106, %c0_107, %c0_108] : memref<9x8x8xf32, #tpu.memory_space<vmem>>, vector<1x8x8xf32>
    %122 = vector.shape_cast %121 : vector<1x8x8xf32> to vector<8x8xf32>
    %cst_109 = arith.constant dense<0.000000e+00> : vector<8x64xf32>
    %123 = tpu.matmul %122, %120, %cst_109 {dimension_numbers = #tpu.dot_dimension_numbers<[1], [0], [0], [1], [0, 0, 1, 1], [], []>} : vector<8x8xf32>, vector<8x64xf32>, vector<8x64xf32> -> vector<8x64xf32>
    %124 = arith.addf %119, %123 : vector<8x64xf32>
    %c0_110 = arith.constant 0 : index
    %c17_111 = arith.constant 17 : index
    %125 = vector.load %arg7[%c0_110, %c17_111] : memref<8x82xf32, #tpu.memory_space<vmem>>, vector<8x64xf32>
    %c7_112 = arith.constant 7 : index
    %c0_113 = arith.constant 0 : index
    %c0_114 = arith.constant 0 : index
    %126 = vector.load %arg4[%c7_112, %c0_113, %c0_114] : memref<9x8x8xf32, #tpu.memory_space<vmem>>, vector<1x8x8xf32>
    %127 = vector.shape_cast %126 : vector<1x8x8xf32> to vector<8x8xf32>
    %cst_115 = arith.constant dense<0.000000e+00> : vector<8x64xf32>
    %128 = tpu.matmul %127, %125, %cst_115 {dimension_numbers = #tpu.dot_dimension_numbers<[1], [0], [0], [1], [0, 0, 1, 1], [], []>} : vector<8x8xf32>, vector<8x64xf32>, vector<8x64xf32> -> vector<8x64xf32>
    %129 = arith.addf %124, %128 : vector<8x64xf32>
    %130 = arith.addf %115, %129 : vector<8x64xf32>
    %c0_116 = arith.constant 0 : index
    %c2_117 = arith.constant 2 : index
    %131 = vector.load %arg7[%c0_116, %c2_117] : memref<8x82xf32, #tpu.memory_space<vmem>>, vector<8x64xf32>
    %c2_118 = arith.constant 2 : index
    %c0_119 = arith.constant 0 : index
    %c0_120 = arith.constant 0 : index
    %132 = vector.load %arg4[%c2_118, %c0_119, %c0_120] : memref<9x8x8xf32, #tpu.memory_space<vmem>>, vector<1x8x8xf32>
    %133 = vector.shape_cast %132 : vector<1x8x8xf32> to vector<8x8xf32>
    %cst_121 = arith.constant dense<0.000000e+00> : vector<8x64xf32>
    %134 = tpu.matmul %133, %131, %cst_121 {dimension_numbers = #tpu.dot_dimension_numbers<[1], [0], [0], [1], [0, 0, 1, 1], [], []>} : vector<8x8xf32>, vector<8x64xf32>, vector<8x64xf32> -> vector<8x64xf32>
    %c0_122 = arith.constant 0 : index
    %c10_123 = arith.constant 10 : index
    %135 = vector.load %arg7[%c0_122, %c10_123] : memref<8x82xf32, #tpu.memory_space<vmem>>, vector<8x64xf32>
    %c5_124 = arith.constant 5 : index
    %c0_125 = arith.constant 0 : index
    %c0_126 = arith.constant 0 : index
    %136 = vector.load %arg4[%c5_124, %c0_125, %c0_126] : memref<9x8x8xf32, #tpu.memory_space<vmem>>, vector<1x8x8xf32>
    %137 = vector.shape_cast %136 : vector<1x8x8xf32> to vector<8x8xf32>
    %cst_127 = arith.constant dense<0.000000e+00> : vector<8x64xf32>
    %138 = tpu.matmul %137, %135, %cst_127 {dimension_numbers = #tpu.dot_dimension_numbers<[1], [0], [0], [1], [0, 0, 1, 1], [], []>} : vector<8x8xf32>, vector<8x64xf32>, vector<8x64xf32> -> vector<8x64xf32>
    %139 = arith.addf %134, %138 : vector<8x64xf32>
    %c0_128 = arith.constant 0 : index
    %c18_129 = arith.constant 18 : index
    %140 = vector.load %arg7[%c0_128, %c18_129] : memref<8x82xf32, #tpu.memory_space<vmem>>, vector<8x64xf32>
    %c8_130 = arith.constant 8 : index
    %c0_131 = arith.constant 0 : index
    %c0_132 = arith.constant 0 : index
    %141 = vector.load %arg4[%c8_130, %c0_131, %c0_132] : memref<9x8x8xf32, #tpu.memory_space<vmem>>, vector<1x8x8xf32>
    %142 = vector.shape_cast %141 : vector<1x8x8xf32> to vector<8x8xf32>
    %cst_133 = arith.constant dense<0.000000e+00> : vector<8x64xf32>
    %143 = tpu.matmul %142, %140, %cst_133 {dimension_numbers = #tpu.dot_dimension_numbers<[1], [0], [0], [1], [0, 0, 1, 1], [], []>} : vector<8x8xf32>, vector<8x64xf32>, vector<8x64xf32> -> vector<8x64xf32>
    %144 = arith.addf %139, %143 : vector<8x64xf32>
    %cst_134 = arith.constant 0.000000e+00 : f32
    %145 = vector.shape_cast %20 : vector<1x64xi1> to vector<1x64xi1>
    %146 = vector.broadcast %145 : vector<1x64xi1> to vector<8x64xi1>
    %147 = vector.broadcast %cst_134 : f32 to vector<8x64xf32>
    %148 = arith.select %146, %144, %147 : vector<8x64xi1>, vector<8x64xf32>
    %149 = arith.addf %130, %148 : vector<8x64xf32>
    %150 = vector.broadcast %93 : vector<8x1xf32> to vector<8x64xf32>
    %151 = arith.addf %149, %150 : vector<8x64xf32>
    %cst_135 = arith.constant 0.000000e+00 : f32
    %152 = vector.broadcast %cst_135 : f32 to vector<8x64xf32>
    %153 = arith.maximumf %151, %152 : vector<8x64xf32>
    %c0_136 = arith.constant 0 : index
    %c0_137 = arith.constant 0 : index
    %c0_138 = arith.constant 0 : index
    %154 = vector.load %arg6[%c0_136, %c0_137, %c0_138] : memref<1x8x64xf32, #tpu.memory_space<vmem>>, vector<1x8x64xf32>
    %155 = vector.shape_cast %154 : vector<1x8x64xf32> to vector<8x64xf32>
    %156 = vector.shape_cast %153 : vector<8x64xf32> to vector<1x8x64xf32>
    tpu.vector_store %arg6[%c0_136, %c0_137, %c0_138], %156 {strides = array<i32>} : memref<1x8x64xf32, #tpu.memory_space<vmem>>, vector<1x8x64xf32>,
    return
  }
  func.func @transform_0(%arg0: i32) -> (i32, i32, i32, i32) {
    %c0_i32 = arith.constant 0 : i32
    %c0_i32_0 = arith.constant 0 : i32
    %c0_i32_1 = arith.constant 0 : i32
    %c0_i32_2 = arith.constant 0 : i32
    return %arg0, %c0_i32, %c0_i32_0, %c0_i32_1 : i32, i32, i32, i32
  }
  func.func @transform_1(%arg0: i32) -> (i32, i32, i32) {
    %c0_i32 = arith.constant 0 : i32
    %c0_i32_0 = arith.constant 0 : i32
    %c0_i32_1 = arith.constant 0 : i32
    %c0_i32_2 = arith.constant 0 : i32
    return %c0_i32, %c0_i32_0, %c0_i32_1 : i32, i32, i32
  }
  func.func @transform_2(%arg0: i32) -> (i32, i32) {
    %c0_i32 = arith.constant 0 : i32
    %c0_i32_0 = arith.constant 0 : i32
    %c0_i32_1 = arith.constant 0 : i32
    return %c0_i32, %c0_i32_0 : i32, i32
  }
  func.func @transform_3(%arg0: i32) -> (i32, i32, i32) {
    %c0_i32 = arith.constant 0 : i32
    %c0_i32_0 = arith.constant 0 : i32
    %c0_i32_1 = arith.constant 0 : i32
    %c0_i32_2 = arith.constant 0 : i32
    return %c0_i32, %c0_i32_0, %c0_i32_1 : i32, i32, i32
  }
  func.func @transform_4(%arg0: i32) -> (i32, i32) {
    %c0_i32 = arith.constant 0 : i32
    %c0_i32_0 = arith.constant 0 : i32
    %c0_i32_1 = arith.constant 0 : i32
    return %c0_i32, %c0_i32_0 : i32, i32
  }
  func.func @transform_5(%arg0: i32) -> (i32, i32, i32) {
    %c0_i32 = arith.constant 0 : i32
    %c0_i32_0 = arith.constant 0 : i32
    %c0_i32_1 = arith.constant 0 : i32
    return %arg0, %c0_i32, %c0_i32_0 : i32, i32, i32
  }
}

</mosaic_0001>

<llo_original>
// kernel: tpu_custom_call.1
$region0: #{tpu_custom_call.1}
  #allocation0 [shape = 'u32[]', space=smem, size = 0x4, offset = 0x4, fixed_abs, tag = 'smem constant byte address 0x4 - core index']
  #allocation1 [shape = 'u32[72,128]{1,0:T(1,128)}', space=vmem, size = 0x9000, scoped, tag = 'internal scratch']
  #allocation2 [shape = 'f32[8,82]{1,0:T(8,128)}', space=vmem, size = 0x1000, scoped, tag = 'scratch operand']
  %s0 = inlined_call_operand.vmem [shape: f32[2,4,4,64], index: 0, kind: input, shape index: {}]
  %s1 = inlined_call_operand.vmem [shape: f32[9,8,4], index: 1, kind: input, shape index: {}]
  %s2 = inlined_call_operand.vmem [shape: f32[8,1], index: 2, kind: input, shape index: {}]
  %s3 = inlined_call_operand.vmem [shape: f32[9,8,8], index: 3, kind: input, shape index: {}]
  %s4 = inlined_call_operand.vmem [shape: f32[8,1], index: 4, kind: input, shape index: {}]
  %s5 = inlined_call_operand.hbm [shape: f32[2,8,64], index: 5, kind: output, shape index: {}]
  %s6 = sld [smem:[#allocation0]]
  $region53: #{tpu_custom_call.1} parent=0
    _
  %s8 = ssub.s32 1, %s6
  %s9 = scalar_select 0, %s8, %s6
  $region1: #{tpu_custom_call.1} parent=0
    #allocation3 [shape = 'u8[8192]{0}', space=vmem, size = 0x2000, scoped, tag = 'output window, operand 0']
    #allocation4 [shape = 's32[2]{0}', space=sflag, size = 0x8, scoped, tag = 'scoped memory for tpu_custom_call.1']
    %10 = vsyncpa [#allocation4], 0
    %s11 = scalar_lea.sflag [#allocation4], 1
    %12 = vsyncpa %s11, 0
    loop: start=0, step=1, limit=4
    $region2: #{tpu_custom_call.1} parent=1 // loop_pre_header
      _
    $region3: #{tpu_custom_call.1} parent=1 // loop_header
      %s14 = sphi 0, %s18
      %p15 = scmp.ge.s32.totalorder %s14, 4
      %s24 = sphi 0, %s26
      %s27 = sphi 0, %s24
      %s28 = sphi 0, %s27
      %s44 = sphi 0, %s28
      %s48 = sphi 0, %s48
      %s50 = sphi 0, %s48
      %s51 = sphi 0, %s50
      %s65 = sphi 0, %s51
      %s69 = sphi 0, %s69
      %s71 = sphi 0, %s69
      %s72 = sphi 0, %s71
      %s86 = sphi 0, %s72
      %s90 = sphi 0, %s90
      %s92 = sphi 0, %s90
      %s93 = sphi 0, %s92
      %s107 = sphi 0, %s93
      %s111 = sphi 0, %s111
      %s113 = sphi 0, %s111
      %s114 = sphi 0, %s113
      %s128 = sphi 0, %s114
      %s134 = sphi 0, %s136
      %s137 = sphi 0, %s134
      %s138 = sphi 0, %s137
      %s154 = sphi 0, %s138
    $region4: #{tpu_custom_call.1} parent=1 // loop_header_branch
      %17 = sbr.rel (%p15) target = $region8
    $region5: #{tpu_custom_call.1} parent=1 // loop_body
      %s19 = ssub.s32 %s14, 1
      %s20 = ssub.s32 %s14, 2
      %s21 = sadd.s32 %s14, 1
      %s22 = ssub.s32 %s14, %s21
      %p23 = scmp.eq.s32.totalorder %s22, 0
      %s25 = sadd.s32 %s24, 1
      %s26 = scalar_select %p23, %s24, %s25
      %p29 = pneg %p23
      %p30 = scmp.eq.s32.totalorder %s14, 1
      %p31 = por %p29, %p30
      %p32 = scmp.ne.s32.totalorder %s24, %s27
      %p33 = scmp.eq.s32.totalorder %s14, 0
      %p34 = por %p32, %p33
      %p35 = scmp.ne.s32.totalorder %s24, %s27
      %p36 = scmp.eq.s32.totalorder %s19, 1
      %p37 = por %p35, %p36
      %p38 = scmp.ne.s32.totalorder %s27, %s28
      %p39 = scmp.eq.s32.totalorder %s19, 0
      %p40 = por %p38, %p39
      %p41 = scmp.ne.s32.totalorder %s27, %s28
      %p42 = scmp.eq.s32.totalorder %s20, 1
      %p43 = por %p41, %p42
      %p45 = scmp.ne.s32.totalorder %s28, %s44
      %p46 = scmp.eq.s32.totalorder %s20, 0
      %p47 = por %p45, %p46
      %s49 = sadd.s32 %s48, 1
      %p52 = scmp.eq.s32.totalorder %s14, 1
      %p53 = scmp.ne.s32.totalorder %s48, %s50
      %p54 = scmp.eq.s32.totalorder %s14, 0
      %p55 = por %p53, %p54
      %p56 = scmp.ne.s32.totalorder %s48, %s50
      %p57 = scmp.eq.s32.totalorder %s19, 1
      %p58 = por %p56, %p57
      %p59 = scmp.ne.s32.totalorder %s50, %s51
      %p60 = scmp.eq.s32.totalorder %s19, 0
      %p61 = por %p59, %p60
      %p62 = scmp.ne.s32.totalorder %s50, %s51
      %p63 = scmp.eq.s32.totalorder %s20, 1
      %p64 = por %p62, %p63
      %p66 = scmp.ne.s32.totalorder %s51, %s65
      %p67 = scmp.eq.s32.totalorder %s20, 0
      %p68 = por %p66, %p67
      %s70 = sadd.s32 %s69, 1
      %p73 = scmp.eq.s32.totalorder %s14, 1
      %p74 = scmp.ne.s32.totalorder %s69, %s71
      %p75 = scmp.eq.s32.totalorder %s14, 0
      %p76 = por %p74, %p75
      %p77 = scmp.ne.s32.totalorder %s69, %s71
      %p78 = scmp.eq.s32.totalorder %s19, 1
      %p79 = por %p77, %p78
      %p80 = scmp.ne.s32.totalorder %s71, %s72
      %p81 = scmp.eq.s32.totalorder %s19, 0
      %p82 = por %p80, %p81
      %p83 = scmp.ne.s32.totalorder %s71, %s72
      %p84 = scmp.eq.s32.totalorder %s20, 1
      %p85 = por %p83, %p84
      %p87 = scmp.ne.s32.totalorder %s72, %s86
      %p88 = scmp.eq.s32.totalorder %s20, 0
      %p89 = por %p87, %p88
      %s91 = sadd.s32 %s90, 1
      %p94 = scmp.eq.s32.totalorder %s14, 1
      %p95 = scmp.ne.s32.totalorder %s90, %s92
      %p96 = scmp.eq.s32.totalorder %s14, 0
      %p97 = por %p95, %p96
      %p98 = scmp.ne.s32.totalorder %s90, %s92
      %p99 = scmp.eq.s32.totalorder %s19, 1
      %p100 = por %p98, %p99
      %p101 = scmp.ne.s32.totalorder %s92, %s93
      %p102 = scmp.eq.s32.totalorder %s19, 0
      %p103 = por %p101, %p102
      %p104 = scmp.ne.s32.totalorder %s92, %s93
      %p105 = scmp.eq.s32.totalorder %s20, 1
      %p106 = por %p104, %p105
      %p108 = scmp.ne.s32.totalorder %s93, %s107
      %p109 = scmp.eq.s32.totalorder %s20, 0
      %p110 = por %p108, %p109
      %s112 = sadd.s32 %s111, 1
      %p115 = scmp.eq.s32.totalorder %s14, 1
      %p116 = scmp.ne.s32.totalorder %s111, %s113
      %p117 = scmp.eq.s32.totalorder %s14, 0
      %p118 = por %p116, %p117
      %p119 = scmp.ne.s32.totalorder %s111, %s113
      %p120 = scmp.eq.s32.totalorder %s19, 1
      %p121 = por %p119, %p120
      %p122 = scmp.ne.s32.totalorder %s113, %s114
      %p123 = scmp.eq.s32.totalorder %s19, 0
      %p124 = por %p122, %p123
      %p125 = scmp.ne.s32.totalorder %s113, %s114
      %p126 = scmp.eq.s32.totalorder %s20, 1
      %p127 = por %p125, %p126
      %p129 = scmp.ne.s32.totalorder %s114, %s128
      %p130 = scmp.eq.s32.totalorder %s20, 0
      %p131 = por %p129, %p130
      %s132 = ssub.s32 %s14, %s21
      %p133 = scmp.eq.s32.totalorder %s132, 0
      %s135 = sadd.s32 %s134, 1
      %s136 = scalar_select %p133, %s134, %s135
      %p139 = pneg %p133
      %p140 = scmp.eq.s32.totalorder %s14, 1
      %p141 = por %p139, %p140
      %p142 = scmp.ne.s32.totalorder %s134, %s137
      %p143 = scmp.eq.s32.totalorder %s14, 0
      %p144 = por %p142, %p143
      %p145 = scmp.ne.s32.totalorder %s134, %s137
      %p146 = scmp.eq.s32.totalorder %s19, 1
      %p147 = por %p145, %p146
      %p148 = scmp.ne.s32.totalorder %s137, %s138
      %p149 = scmp.eq.s32.totalorder %s19, 0
      %p150 = por %p148, %p149
      %p151 = scmp.ne.s32.totalorder %s137, %s138
      %p152 = scmp.eq.s32.totalorder %s20, 1
      %p153 = por %p151, %p152
      %p155 = scmp.ne.s32.totalorder %s138, %s154
      %p156 = scmp.eq.s32.totalorder %s20, 0
      %p157 = por %p155, %p156
      %p158 = scmp.le.s32.totalorder 1, %s14
      %p159 = scmp.lt.s32.totalorder %s14, 3
      %p160 = pnand %p158, %p159
      %p161 = pneg %p160
      // Predicated region
      $region9: #{tpu_custom_call.1} parent=5 // pred_check
        _
      $region10: #{tpu_custom_call.1} parent=5 // pred_check_branch
        %163 = sbr.rel (%p160) target = $region12
      $region11: #{tpu_custom_call.1} parent=5 // pred_region
        %s164 = ssub.s32 %s14, 1
        // Predicated region
        $region13: #{tpu_custom_call.1} parent=11 // pred_check
          %p165 = pneg %p61
        $region14: #{tpu_custom_call.1} parent=11 // pred_check_branch
          %167 = sbr.rel (%p165) target = $region16
        $region15: #{tpu_custom_call.1} parent=11 // pred_region
          _
        $region16: #{tpu_custom_call.1} parent=11 // pred_fallthru
          _
        // Predicated region
        $region17: #{tpu_custom_call.1} parent=11 // pred_check
          %p168 = pneg %p82
        $region18: #{tpu_custom_call.1} parent=11 // pred_check_branch
          %170 = sbr.rel (%p168) target = $region20
        $region19: #{tpu_custom_call.1} parent=11 // pred_region
          _
        $region20: #{tpu_custom_call.1} parent=11 // pred_fallthru
          _
        // Predicated region
        $region21: #{tpu_custom_call.1} parent=11 // pred_check
          %p171 = pneg %p103
        $region22: #{tpu_custom_call.1} parent=11 // pred_check_branch
          %173 = sbr.rel (%p171) target = $region24
        $region23: #{tpu_custom_call.1} parent=11 // pred_region
          _
        $region24: #{tpu_custom_call.1} parent=11 // pred_fallthru
          _
        // Predicated region
        $region25: #{tpu_custom_call.1} parent=11 // pred_check
          %p174 = pneg %p124
        $region26: #{tpu_custom_call.1} parent=11 // pred_check_branch
          %176 = sbr.rel (%p174) target = $region28
        $region27: #{tpu_custom_call.1} parent=11 // pred_region
          _
        $region28: #{tpu_custom_call.1} parent=11 // pred_fallthru
          _
      $region12: #{tpu_custom_call.1} parent=5 // pred_fallthru
        _
      %p177 = scmp.lt.s32.totalorder %s14, 2
      // Predicated region
      $region29: #{tpu_custom_call.1} parent=5 // pred_check
        %p178 = pneg %p177
      $region30: #{tpu_custom_call.1} parent=5 // pred_check_branch
        %180 = sbr.rel (%p178) target = $region32
      $region31: #{tpu_custom_call.1} parent=5 // pred_region
        // Predicated region
        $region33: #{tpu_custom_call.1} parent=31 // pred_check
          %p181 = pneg %p34
        $region34: #{tpu_custom_call.1} parent=31 // pred_check_branch
          %183 = sbr.rel (%p181) target = $region36
        $region35: #{tpu_custom_call.1} parent=31 // pred_region
          %p184 = scmp.lt.s32.totalorder %s14, 1
          %s185 = scalar_select %p184, %s14, 1
          %s186 = smul.addr %s185, 4
          %s187 = smul.addr %s186, 4
          %s188 = scalar_lea.vmem %s0, %s187
        $region36: #{tpu_custom_call.1} parent=31 // pred_fallthru
          _
      $region32: #{tpu_custom_call.1} parent=5 // pred_fallthru
        _
      %p189 = scmp.le.s32.totalorder 1, %s14
      %p190 = scmp.lt.s32.totalorder %s14, 3
      %p191 = pnand %p189, %p190
      %p192 = pneg %p191
      // Predicated region
      $region37: #{tpu_custom_call.1} parent=5 // pred_check
        _
      $region38: #{tpu_custom_call.1} parent=5 // pred_check_branch
        %194 = sbr.rel (%p191) target = $region40
      $region39: #{tpu_custom_call.1} parent=5 // pred_region
        %s195 = ssub.s32 %s14, 1
        %p196 = scmp.lt.s32.totalorder %s19, 1
        %s197 = scalar_select %p196, %s19, 1
        %s198 = smul.addr %s197, 4
        %s199 = smul.addr %s198, 4
        %s200 = scalar_lea.vmem %s0, %s199
        %p201 = pneg %p40
        %p202 = pneg %p37
        %p203 = pneg %p61
        %p204 = pneg %p58
        %p205 = pneg %p82
        %p206 = pneg %p79
        %p207 = pneg %p103
        %p208 = pneg %p100
        %p209 = pneg %p124
        %p210 = pneg %p121
        %p211 = pneg %p150
        %p212 = pneg %p147
        %s213 = sand.u32 %s137, 1
        %s214 = scalar_lea.sflag [#allocation4], %s213
        %s215 = sand.u32 %s137, 1
        %s216 = smul.addr %s215, 8
        %s217 = scalar_lea.vmem [#allocation3], %s216
        %p218 = scmp.lt.s32.totalorder %s19, 1
        %s219 = scalar_select %p218, %s19, 1
        %s220 = smul.addr %s219, 4
        %s221 = smul.addr %s220, 4
        %s222 = scalar_lea.vmem %s0, %s221
        %v223 = vlaneseq
        %v224 = vand.u32 %v223, 127
        %vm225 = vcmp.lt.s32.totalorder %v224, 0
        %v226 = vsub.s32 0, %v224
        %v227 = vsel %vm225, %v226, %v224
        %v228 = vshrl.u32 %v227, 3
        %v229 = vand.u32 %v227, 7
        %v230 = vsub.s32 0, %v229
        %v231 = vsel %vm225, %v230, %v229
        %vm232 = vcmp.ne.s32.totalorder %v231, 0
        %vm233 = vcmp.lt.s32.totalorder %v231, 0
        %vm234 = vmand %vm233, %vm232
        %v235 = vadd.s32 %v231, 8
        %v236 = vsel %vm234, %v235, %v231
        %vm237 = vcmp.ge.s32.totalorder %v236, 1
        %vm238 = vcmp.lt.s32.totalorder %v236, 7
        %v239 = vld [vmem:[%s222] sm:$0xf]
        %s240 = scalar_lea.vmem %s222, 4
        %v241 = vld [vmem:[%s240] sm:$0xf]
        %v242 = vmax.f32 %v239, %v241
        %s243 = scalar_lea.vmem %s222, 8
        %v244 = vld [vmem:[%s243] sm:$0xf]
        %s245 = scalar_lea.vmem %s222, 12
        %v246 = vld [vmem:[%s245] sm:$0xf]
        %v247 = vmax.f32 %v244, %v246
        %v248 = vmax.f32 %v242, %v247
        %v249 = vld [vmem:[%s2] sm:$0xff]
        %vm250 = vcmask 68608
        %251 = vst.msk [vmem:[#allocation2] sm:$0xf] %vm250, 0.0
        %vm252 = vcmask 667208
        %253 = vst.msk [vmem:[#allocation2] sm:$0xf] %vm252, 0.0
        %255 = vrot.lane.b32.xlu0 %v248, 9
        %v256 = vpop.permute.xlu0 %255
        %vm258 = vcmask 592968
        %259 = vst.msk [vmem:[#allocation2] sm:$0xf] %vm258, %v256
        %v260 = vld [vmem:[#allocation2] sm:$0xf]
        %v261 = vld [vmem:[%s1] sm:$0xff]
        %s262 = scalar_lea.vmem %s1, 24
        %v263 = vld [vmem:[%s262] sm:$0xff]
        %265 = vrot.lane.b32.xlu0 %v260, 120
        %v266 = vpop.permute.xlu0 %265
        %vm267 = vcmask 31744
        %v269 = vsel %vm267, %v263, 0
        %vm271 = vcmask 1043456
        %v272 = vsel %vm271, %v266, 0
        %274 = vmatpush.msra.mxu0 0.0
        %275 = vmatpush.msra.mxu0 0.0
        %276 = vmatpush.msra.mxu0 0.0
        %277 = vmatpush.msra.mxu0 0.0
        %278 = vmatpush.msra.mxu0 0.0
        %279 = vmatpush.msra.mxu0 0.0
        %280 = vmatpush.msra.mxu0 0.0
        %281 = vmatpush.msra.mxu0 0.0
        %282 = vmatpush.msra.mxu0 0.0
        %283 = vmatpush.msra.mxu0 0.0
        %284 = vmatpush.msra.mxu0 0.0
        %285 = vmatpush.msra.mxu0 0.0
        %286 = vmatpush.msra.mxu0 0.0
        %287 = vmatpush.msra.mxu0 0.0
        %288 = vmatpush.msra.mxu0 0.0
        %289 = vmatpush.msra.mxu0 %v272
        %290 = vmatmul.f32.gmra.mxu0 %v269
        %v291 = vpop.f32.mrf.mxu0
        %v292 = vadd.f32 0.0, %v291
        %293 = vdwg.mxu0
        %v295 = vsel %vm267, %v261, 0
        %v297 = vsel %vm271, %v260, 0
        %299 = vmatpush.msra.mxu0 0.0
        %300 = vmatpush.msra.mxu0 0.0
        %301 = vmatpush.msra.mxu0 0.0
        %302 = vmatpush.msra.mxu0 0.0
        %303 = vmatpush.msra.mxu0 0.0
        %304 = vmatpush.msra.mxu0 0.0
        %305 = vmatpush.msra.mxu0 0.0
        %306 = vmatpush.msra.mxu0 0.0
        %307 = vmatpush.msra.mxu0 0.0
        %308 = vmatpush.msra.mxu0 0.0
        %309 = vmatpush.msra.mxu0 0.0
        %310 = vmatpush.msra.mxu0 0.0
        %311 = vmatpush.msra.mxu0 0.0
        %312 = vmatpush.msra.mxu0 0.0
        %313 = vmatpush.msra.mxu0 0.0
        %314 = vmatpush.msra.mxu0 %v297
        %315 = vmatmul.f32.gmra.mxu0 %v295
        %v316 = vpop.f32.mrf.mxu0
        %v317 = vadd.f32 %v292, %v316
        %318 = vdwg.mxu0
        %s319 = scalar_lea.vmem %s1, 48
        %v320 = vld [vmem:[%s319] sm:$0xff]
        %321 = vrot.lane.b32.xlu0 %v260, 112
        %v322 = vpop.permute.xlu0 %321
        %v324 = vsel %vm267, %v320, 0
        %v326 = vsel %vm271, %v322, 0
        %328 = vmatpush.msra.mxu0 0.0
        %329 = vmatpush.msra.mxu0 0.0
        %330 = vmatpush.msra.mxu0 0.0
        %331 = vmatpush.msra.mxu0 0.0
        %332 = vmatpush.msra.mxu0 0.0
        %333 = vmatpush.msra.mxu0 0.0
        %334 = vmatpush.msra.mxu0 0.0
        %335 = vmatpush.msra.mxu0 0.0
        %336 = vmatpush.msra.mxu0 0.0
        %337 = vmatpush.msra.mxu0 0.0
        %338 = vmatpush.msra.mxu0 0.0
        %339 = vmatpush.msra.mxu0 0.0
        %340 = vmatpush.msra.mxu0 0.0
        %341 = vmatpush.msra.mxu0 0.0
        %342 = vmatpush.msra.mxu0 0.0
        %343 = vmatpush.msra.mxu0 %v326
        %344 = vmatmul.f32.gmra.mxu0 %v324
        %v345 = vpop.f32.mrf.mxu0
        %v346 = vadd.f32 0.0, %v345
        %347 = vdwg.mxu0
        %v348 = vadd.f32 %v317, %v346
        %v349 = vsel %vm237, 1, 0
        %vm350 = vcmp.eq.s32.totalorder %v349, 1
        %v351 = vsel %vm350, %v348, 0.0
        %s352 = scalar_lea.vmem %s1, 8
        %v353 = vld [vmem:[%s352] sm:$0xff]
        %s354 = scalar_lea.vmem %s1, 32
        %v355 = vld [vmem:[%s354] sm:$0xff]
        %356 = vrot.lane.b32.xlu0 %v260, 119
        %v357 = vpop.permute.xlu0 %356
        %v359 = vsel %vm267, %v355, 0
        %v361 = vsel %vm271, %v357, 0
        %363 = vmatpush.msra.mxu0 0.0
        %364 = vmatpush.msra.mxu0 0.0
        %365 = vmatpush.msra.mxu0 0.0
        %366 = vmatpush.msra.mxu0 0.0
        %367 = vmatpush.msra.mxu0 0.0
        %368 = vmatpush.msra.mxu0 0.0
        %369 = vmatpush.msra.mxu0 0.0
        %370 = vmatpush.msra.mxu0 0.0
        %371 = vmatpush.msra.mxu0 0.0
        %372 = vmatpush.msra.mxu0 0.0
        %373 = vmatpush.msra.mxu0 0.0
        %374 = vmatpush.msra.mxu0 0.0
        %375 = vmatpush.msra.mxu0 0.0
        %376 = vmatpush.msra.mxu0 0.0
        %377 = vmatpush.msra.mxu0 0.0
        %378 = vmatpush.msra.mxu0 %v361
        %379 = vmatmul.f32.gmra.mxu0 %v359
        %v380 = vpop.f32.mrf.mxu0
        %v381 = vadd.f32 0.0, %v380
        %382 = vdwg.mxu0
        %383 = vrot.lane.b32.xlu0 %v260, 127
        %v384 = vpop.permute.xlu0 %383
        %v386 = vsel %vm267, %v353, 0
        %v388 = vsel %vm271, %v384, 0
        %390 = vmatpush.msra.mxu0 0.0
        %391 = vmatpush.msra.mxu0 0.0
        %392 = vmatpush.msra.mxu0 0.0
        %393 = vmatpush.msra.mxu0 0.0
        %394 = vmatpush.msra.mxu0 0.0
        %395 = vmatpush.msra.mxu0 0.0
        %396 = vmatpush.msra.mxu0 0.0
        %397 = vmatpush.msra.mxu0 0.0
        %398 = vmatpush.msra.mxu0 0.0
        %399 = vmatpush.msra.mxu0 0.0
        %400 = vmatpush.msra.mxu0 0.0
        %401 = vmatpush.msra.mxu0 0.0
        %402 = vmatpush.msra.mxu0 0.0
        %403 = vmatpush.msra.mxu0 0.0
        %404 = vmatpush.msra.mxu0 0.0
        %405 = vmatpush.msra.mxu0 %v388
        %406 = vmatmul.f32.gmra.mxu0 %v386
        %v407 = vpop.f32.mrf.mxu0
        %v408 = vadd.f32 %v381, %v407
        %409 = vdwg.mxu0
        %s410 = scalar_lea.vmem %s1, 56
        %v411 = vld [vmem:[%s410] sm:$0xff]
        %412 = vrot.lane.b32.xlu0 %v260, 111
        %v413 = vpop.permute.xlu0 %412
        %v415 = vsel %vm267, %v411, 0
        %v417 = vsel %vm271, %v413, 0
        %419 = vmatpush.msra.mxu0 0.0
        %420 = vmatpush.msra.mxu0 0.0
        %421 = vmatpush.msra.mxu0 0.0
        %422 = vmatpush.msra.mxu0 0.0
        %423 = vmatpush.msra.mxu0 0.0
        %424 = vmatpush.msra.mxu0 0.0
        %425 = vmatpush.msra.mxu0 0.0
        %426 = vmatpush.msra.mxu0 0.0
        %427 = vmatpush.msra.mxu0 0.0
        %428 = vmatpush.msra.mxu0 0.0
        %429 = vmatpush.msra.mxu0 0.0
        %430 = vmatpush.msra.mxu0 0.0
        %431 = vmatpush.msra.mxu0 0.0
        %432 = vmatpush.msra.mxu0 0.0
        %433 = vmatpush.msra.mxu0 0.0
        %434 = vmatpush.msra.mxu0 %v417
        %435 = vmatmul.f32.gmra.mxu0 %v415
        %v436 = vpop.f32.mrf.mxu0
        %v437 = vadd.f32 0.0, %v436
        %438 = vdwg.mxu0
        %v439 = vadd.f32 %v408, %v437
        %v440 = vadd.f32 %v351, %v439
        %s441 = scalar_lea.vmem %s1, 16
        %v442 = vld [vmem:[%s441] sm:$0xff]
        %s443 = scalar_lea.vmem %s1, 40
        %v444 = vld [vmem:[%s443] sm:$0xff]
        %445 = vrot.lane.b32.xlu0 %v260, 118
        %v446 = vpop.permute.xlu0 %445
        %v448 = vsel %vm267, %v444, 0
        %v450 = vsel %vm271, %v446, 0
        %452 = vmatpush.msra.mxu0 0.0
        %453 = vmatpush.msra.mxu0 0.0
        %454 = vmatpush.msra.mxu0 0.0
        %455 = vmatpush.msra.mxu0 0.0
        %456 = vmatpush.msra.mxu0 0.0
        %457 = vmatpush.msra.mxu0 0.0
        %458 = vmatpush.msra.mxu0 0.0
        %459 = vmatpush.msra.mxu0 0.0
        %460 = vmatpush.msra.mxu0 0.0
        %461 = vmatpush.msra.mxu0 0.0
        %462 = vmatpush.msra.mxu0 0.0
        %463 = vmatpush.msra.mxu0 0.0
        %464 = vmatpush.msra.mxu0 0.0
        %465 = vmatpush.msra.mxu0 0.0
        %466 = vmatpush.msra.mxu0 0.0
        %467 = vmatpush.msra.mxu0 %v450
        %468 = vmatmul.f32.gmra.mxu0 %v448
        %v469 = vpop.f32.mrf.mxu0
        %v470 = vadd.f32 0.0, %v469
        %471 = vdwg.mxu0
        %472 = vrot.lane.b32.xlu0 %v260, 126
        %v473 = vpop.permute.xlu0 %472
        %v475 = vsel %vm267, %v442, 0
        %v477 = vsel %vm271, %v473, 0
        %479 = vmatpush.msra.mxu0 0.0
        %480 = vmatpush.msra.mxu0 0.0
        %481 = vmatpush.msra.mxu0 0.0
        %482 = vmatpush.msra.mxu0 0.0
        %483 = vmatpush.msra.mxu0 0.0
        %484 = vmatpush.msra.mxu0 0.0
        %485 = vmatpush.msra.mxu0 0.0
        %486 = vmatpush.msra.mxu0 0.0
        %487 = vmatpush.msra.mxu0 0.0
        %488 = vmatpush.msra.mxu0 0.0
        %489 = vmatpush.msra.mxu0 0.0
        %490 = vmatpush.msra.mxu0 0.0
        %491 = vmatpush.msra.mxu0 0.0
        %492 = vmatpush.msra.mxu0 0.0
        %493 = vmatpush.msra.mxu0 0.0
        %494 = vmatpush.msra.mxu0 %v477
        %495 = vmatmul.f32.gmra.mxu0 %v475
        %v496 = vpop.f32.mrf.mxu0
        %v497 = vadd.f32 %v470, %v496
        %498 = vdwg.mxu0
        %s499 = scalar_lea.vmem %s1, 64
        %v500 = vld [vmem:[%s499] sm:$0xff]
        %501 = vrot.lane.b32.xlu0 %v260, 110
        %v502 = vpop.permute.xlu0 %501
        %v504 = vsel %vm267, %v500, 0
        %v506 = vsel %vm271, %v502, 0
        %508 = vmatpush.msra.mxu0 0.0
        %509 = vmatpush.msra.mxu0 0.0
        %510 = vmatpush.msra.mxu0 0.0
        %511 = vmatpush.msra.mxu0 0.0
        %512 = vmatpush.msra.mxu0 0.0
        %513 = vmatpush.msra.mxu0 0.0
        %514 = vmatpush.msra.mxu0 0.0
        %515 = vmatpush.msra.mxu0 0.0
        %516 = vmatpush.msra.mxu0 0.0
        %517 = vmatpush.msra.mxu0 0.0
        %518 = vmatpush.msra.mxu0 0.0
        %519 = vmatpush.msra.mxu0 0.0
        %520 = vmatpush.msra.mxu0 0.0
        %521 = vmatpush.msra.mxu0 0.0
        %522 = vmatpush.msra.mxu0 0.0
        %523 = vmatpush.msra.mxu0 %v506
        %524 = vmatmul.f32.gmra.mxu0 %v504
        %v525 = vpop.f32.mrf.mxu0
        %v526 = vadd.f32 0.0, %v525
        %527 = vdwg.mxu0
        %v528 = vadd.f32 %v497, %v526
        %v529 = vsel %vm238, 1, 0
        %vm530 = vcmp.eq.s32.totalorder %v529, 1
        %v531 = vsel %vm530, %v528, 0.0
        %v532 = vadd.f32 %v440, %v531
        %534 = vset.pattern.permute.xlu0 0
        %535 = vperm.xlu0 %534, %v249
        %v536 = vpop.permute.xlu0 %535
        %v538 = vadd.f32 %v532, %v536
        %v539 = vmax.f32 %v538, 0.0
        %v540 = vld [vmem:[%s4] sm:$0xff]
        %vm541 = vcmask 72704
        %542 = vst.msk [vmem:[#allocation2] sm:$0xff] %vm541, 0.0
        %vm543 = vcmask 671304
        %544 = vst.msk [vmem:[#allocation2] sm:$0xff] %vm543, 0.0
        %546 = vrot.lane.b32.xlu0 %v539, 9
        %v547 = vpop.permute.xlu0 %546
        %vm549 = vcmask 597064
        %550 = vst.msk [vmem:[#allocation2] sm:$0xff] %vm549, %v547
        %v551 = vld [vmem:[#allocation2] sm:$0xff]
        %v552 = vld [vmem:[%s3] sm:$0xff]
        %s553 = scalar_lea.vmem %s3, 24
        %v554 = vld [vmem:[%s553] sm:$0xff]
        %556 = vrot.lane.b32.xlu0 %v551, 120
        %v557 = vpop.permute.xlu0 %556
        %vm559 = vcmask 64512
        %v561 = vsel %vm559, %v554, 0
        %563 = vmatpush.msra.mxu0 0.0
        %564 = vmatpush.msra.mxu0 0.0
        %565 = vmatpush.msra.mxu0 0.0
        %566 = vmatpush.msra.mxu0 0.0
        %567 = vmatpush.msra.mxu0 0.0
        %568 = vmatpush.msra.mxu0 0.0
        %569 = vmatpush.msra.mxu0 0.0
        %570 = vmatpush.msra.mxu0 0.0
        %571 = vmatpush.msra.mxu0 0.0
        %572 = vmatpush.msra.mxu0 0.0
        %573 = vmatpush.msra.mxu0 0.0
        %574 = vmatpush.msra.mxu0 0.0
        %575 = vmatpush.msra.mxu0 0.0
        %576 = vmatpush.msra.mxu0 0.0
        %577 = vmatpush.msra.mxu0 0.0
        %578 = vmatpush.msra.mxu0 %v557
        %579 = vmatmul.f32.gmra.mxu0 %v561
        %v580 = vpop.f32.mrf.mxu0
        %v581 = vadd.f32 0.0, %v580
        %582 = vdwg.mxu0
        %v584 = vsel %vm559, %v552, 0
        %586 = vmatpush.msra.mxu0 0.0
        %587 = vmatpush.msra.mxu0 0.0
        %588 = vmatpush.msra.mxu0 0.0
        %589 = vmatpush.msra.mxu0 0.0
        %590 = vmatpush.msra.mxu0 0.0
        %591 = vmatpush.msra.mxu0 0.0
        %592 = vmatpush.msra.mxu0 0.0
        %593 = vmatpush.msra.mxu0 0.0
        %594 = vmatpush.msra.mxu0 0.0
        %595 = vmatpush.msra.mxu0 0.0
        %596 = vmatpush.msra.mxu0 0.0
        %597 = vmatpush.msra.mxu0 0.0
        %598 = vmatpush.msra.mxu0 0.0
        %599 = vmatpush.msra.mxu0 0.0
        %600 = vmatpush.msra.mxu0 0.0
        %601 = vmatpush.msra.mxu0 %v551
        %602 = vmatmul.f32.gmra.mxu0 %v584
        %v603 = vpop.f32.mrf.mxu0
        %v604 = vadd.f32 %v581, %v603
        %605 = vdwg.mxu0
        %s606 = scalar_lea.vmem %s3, 48
        %v607 = vld [vmem:[%s606] sm:$0xff]
        %608 = vrot.lane.b32.xlu0 %v551, 112
        %v609 = vpop.permute.xlu0 %608
        %v612 = vsel %vm559, %v607, 0
        %614 = vmatpush.msra.mxu0 0.0
        %615 = vmatpush.msra.mxu0 0.0
        %616 = vmatpush.msra.mxu0 0.0
        %617 = vmatpush.msra.mxu0 0.0
        %618 = vmatpush.msra.mxu0 0.0
        %619 = vmatpush.msra.mxu0 0.0
        %620 = vmatpush.msra.mxu0 0.0
        %621 = vmatpush.msra.mxu0 0.0
        %622 = vmatpush.msra.mxu0 0.0
        %623 = vmatpush.msra.mxu0 0.0
        %624 = vmatpush.msra.mxu0 0.0
        %625 = vmatpush.msra.mxu0 0.0
        %626 = vmatpush.msra.mxu0 0.0
        %627 = vmatpush.msra.mxu0 0.0
        %628 = vmatpush.msra.mxu0 0.0
        %629 = vmatpush.msra.mxu0 %v609
        %630 = vmatmul.f32.gmra.mxu0 %v612
        %v631 = vpop.f32.mrf.mxu0
        %v632 = vadd.f32 0.0, %v631
        %633 = vdwg.mxu0
        %v634 = vadd.f32 %v604, %v632
        %v635 = vsel %vm350, %v634, 0.0
        %s636 = scalar_lea.vmem %s3, 8
        %v637 = vld [vmem:[%s636] sm:$0xff]
        %s638 = scalar_lea.vmem %s3, 32
        %v639 = vld [vmem:[%s638] sm:$0xff]
        %640 = vrot.lane.b32.xlu0 %v551, 119
        %v641 = vpop.permute.xlu0 %640
        %v644 = vsel %vm559, %v639, 0
        %646 = vmatpush.msra.mxu0 0.0
        %647 = vmatpush.msra.mxu0 0.0
        %648 = vmatpush.msra.mxu0 0.0
        %649 = vmatpush.msra.mxu0 0.0
        %650 = vmatpush.msra.mxu0 0.0
        %651 = vmatpush.msra.mxu0 0.0
        %652 = vmatpush.msra.mxu0 0.0
        %653 = vmatpush.msra.mxu0 0.0
        %654 = vmatpush.msra.mxu0 0.0
        %655 = vmatpush.msra.mxu0 0.0
        %656 = vmatpush.msra.mxu0 0.0
        %657 = vmatpush.msra.mxu0 0.0
        %658 = vmatpush.msra.mxu0 0.0
        %659 = vmatpush.msra.mxu0 0.0
        %660 = vmatpush.msra.mxu0 0.0
        %661 = vmatpush.msra.mxu0 %v641
        %662 = vmatmul.f32.gmra.mxu0 %v644
        %v663 = vpop.f32.mrf.mxu0
        %v664 = vadd.f32 0.0, %v663
        %665 = vdwg.mxu0
        %666 = vrot.lane.b32.xlu0 %v551, 127
        %v667 = vpop.permute.xlu0 %666
        %v670 = vsel %vm559, %v637, 0
        %672 = vmatpush.msra.mxu0 0.0
        %673 = vmatpush.msra.mxu0 0.0
        %674 = vmatpush.msra.mxu0 0.0
        %675 = vmatpush.msra.mxu0 0.0
        %676 = vmatpush.msra.mxu0 0.0
        %677 = vmatpush.msra.mxu0 0.0
        %678 = vmatpush.msra.mxu0 0.0
        %679 = vmatpush.msra.mxu0 0.0
        %680 = vmatpush.msra.mxu0 0.0
        %681 = vmatpush.msra.mxu0 0.0
        %682 = vmatpush.msra.mxu0 0.0
        %683 = vmatpush.msra.mxu0 0.0
        %684 = vmatpush.msra.mxu0 0.0
        %685 = vmatpush.msra.mxu0 0.0
        %686 = vmatpush.msra.mxu0 0.0
        %687 = vmatpush.msra.mxu0 %v667
        %688 = vmatmul.f32.gmra.mxu0 %v670
        %v689 = vpop.f32.mrf.mxu0
        %v690 = vadd.f32 %v664, %v689
        %691 = vdwg.mxu0
        %s692 = scalar_lea.vmem %s3, 56
        %v693 = vld [vmem:[%s692] sm:$0xff]
        %694 = vrot.lane.b32.xlu0 %v551, 111
        %v695 = vpop.permute.xlu0 %694
        %v698 = vsel %vm559, %v693, 0
        %700 = vmatpush.msra.mxu0 0.0
        %701 = vmatpush.msra.mxu0 0.0
        %702 = vmatpush.msra.mxu0 0.0
        %703 = vmatpush.msra.mxu0 0.0
        %704 = vmatpush.msra.mxu0 0.0
        %705 = vmatpush.msra.mxu0 0.0
        %706 = vmatpush.msra.mxu0 0.0
        %707 = vmatpush.msra.mxu0 0.0
        %708 = vmatpush.msra.mxu0 0.0
        %709 = vmatpush.msra.mxu0 0.0
        %710 = vmatpush.msra.mxu0 0.0
        %711 = vmatpush.msra.mxu0 0.0
        %712 = vmatpush.msra.mxu0 0.0
        %713 = vmatpush.msra.mxu0 0.0
        %714 = vmatpush.msra.mxu0 0.0
        %715 = vmatpush.msra.mxu0 %v695
        %716 = vmatmul.f32.gmra.mxu0 %v698
        %v717 = vpop.f32.mrf.mxu0
        %v718 = vadd.f32 0.0, %v717
        %719 = vdwg.mxu0
        %v720 = vadd.f32 %v690, %v718
        %v721 = vadd.f32 %v635, %v720
        %s722 = scalar_lea.vmem %s3, 16
        %v723 = vld [vmem:[%s722] sm:$0xff]
        %s724 = scalar_lea.vmem %s3, 40
        %v725 = vld [vmem:[%s724] sm:$0xff]
        %726 = vrot.lane.b32.xlu0 %v551, 118
        %v727 = vpop.permute.xlu0 %726
        %v730 = vsel %vm559, %v725, 0
        %732 = vmatpush.msra.mxu0 0.0
        %733 = vmatpush.msra.mxu0 0.0
        %734 = vmatpush.msra.mxu0 0.0
        %735 = vmatpush.msra.mxu0 0.0
        %736 = vmatpush.msra.mxu0 0.0
        %737 = vmatpush.msra.mxu0 0.0
        %738 = vmatpush.msra.mxu0 0.0
        %739 = vmatpush.msra.mxu0 0.0
        %740 = vmatpush.msra.mxu0 0.0
        %741 = vmatpush.msra.mxu0 0.0
        %742 = vmatpush.msra.mxu0 0.0
        %743 = vmatpush.msra.mxu0 0.0
        %744 = vmatpush.msra.mxu0 0.0
        %745 = vmatpush.msra.mxu0 0.0
        %746 = vmatpush.msra.mxu0 0.0
        %747 = vmatpush.msra.mxu0 %v727
        %748 = vmatmul.f32.gmra.mxu0 %v730
        %v749 = vpop.f32.mrf.mxu0
        %v750 = vadd.f32 0.0, %v749
        %751 = vdwg.mxu0
        %752 = vrot.lane.b32.xlu0 %v551, 126
        %v753 = vpop.permute.xlu0 %752
        %v756 = vsel %vm559, %v723, 0
        %758 = vmatpush.msra.mxu0 0.0
        %759 = vmatpush.msra.mxu0 0.0
        %760 = vmatpush.msra.mxu0 0.0
        %761 = vmatpush.msra.mxu0 0.0
        %762 = vmatpush.msra.mxu0 0.0
        %763 = vmatpush.msra.mxu0 0.0
        %764 = vmatpush.msra.mxu0 0.0
        %765 = vmatpush.msra.mxu0 0.0
        %766 = vmatpush.msra.mxu0 0.0
        %767 = vmatpush.msra.mxu0 0.0
        %768 = vmatpush.msra.mxu0 0.0
        %769 = vmatpush.msra.mxu0 0.0
        %770 = vmatpush.msra.mxu0 0.0
        %771 = vmatpush.msra.mxu0 0.0
        %772 = vmatpush.msra.mxu0 0.0
        %773 = vmatpush.msra.mxu0 %v753
        %774 = vmatmul.f32.gmra.mxu0 %v756
        %v775 = vpop.f32.mrf.mxu0
        %v776 = vadd.f32 %v750, %v775
        %777 = vdwg.mxu0
        %s778 = scalar_lea.vmem %s3, 64
        %v779 = vld [vmem:[%s778] sm:$0xff]
        %780 = vrot.lane.b32.xlu0 %v551, 110
        %v781 = vpop.permute.xlu0 %780
        %v784 = vsel %vm559, %v779, 0
        %786 = vmatpush.msra.mxu0 0.0
        %787 = vmatpush.msra.mxu0 0.0
        %788 = vmatpush.msra.mxu0 0.0
        %789 = vmatpush.msra.mxu0 0.0
        %790 = vmatpush.msra.mxu0 0.0
        %791 = vmatpush.msra.mxu0 0.0
        %792 = vmatpush.msra.mxu0 0.0
        %793 = vmatpush.msra.mxu0 0.0
        %794 = vmatpush.msra.mxu0 0.0
        %795 = vmatpush.msra.mxu0 0.0
        %796 = vmatpush.msra.mxu0 0.0
        %797 = vmatpush.msra.mxu0 0.0
        %798 = vmatpush.msra.mxu0 0.0
        %799 = vmatpush.msra.mxu0 0.0
        %800 = vmatpush.msra.mxu0 0.0
        %801 = vmatpush.msra.mxu0 %v781
        %802 = vmatmul.f32.gmra.mxu0 %v784
        %v803 = vpop.f32.mrf.mxu0
        %v804 = vadd.f32 0.0, %v803
        %805 = vdwg.mxu0
        %v806 = vadd.f32 %v776, %v804
        %v807 = vsel %vm530, %v806, 0.0
        %v808 = vadd.f32 %v721, %v807
        %810 = vset.pattern.permute.xlu0 0
        %811 = vperm.xlu0 %810, %v540
        %v812 = vpop.permute.xlu0 %811
        %v814 = vadd.f32 %v808, %v812
        %v815 = vmax.f32 %v814, 0.0
        %vm816 = vcmask 523264
        %817 = vst.msk [vmem:[%s217] sm:$0xff] %vm816, %v815
        %s818 = sand.u32 %s137, 1
        %s819 = scalar_lea.sflag [#allocation4], %s818
        %s820 = sand.u32 %s137, 1
        %s821 = smul.addr %s820, 8
        %s822 = scalar_lea.vmem [#allocation3], %s821
        // Predicated region
        $region41: #{tpu_custom_call.1} parent=39 // pred_check
          %p823 = pneg %p147
        $region42: #{tpu_custom_call.1} parent=39 // pred_check_branch
          %825 = sbr.rel (%p823) target = $region44
        $region43: #{tpu_custom_call.1} parent=39 // pred_region
          %827 = vsyncadd %s819, 0
          %s828 = smul.addr %s19, 8
          %s829 = scalar_lea.hbm %s5, %s828
          %s831 = sshll.u32 %s822, 4
          %s832 = int_to_ptr.vmem [resolvable:$true] %s831
          %s833 = sshll.u32 %s829, 4
          %s834 = int_to_ptr.hbm [resolvable:$true] %s833
          %836 = dma.vmem_to_hbm [thread:$0]  %s832, 128, %s834, %s819
        $region44: #{tpu_custom_call.1} parent=39 // pred_fallthru
          _
      $region40: #{tpu_custom_call.1} parent=5 // pred_fallthru
        _
      %p837 = scmp.le.s32.totalorder 2, %s14
      // Predicated region
      $region45: #{tpu_custom_call.1} parent=5 // pred_check
        %p838 = pneg %p837
      $region46: #{tpu_custom_call.1} parent=5 // pred_check_branch
        %840 = sbr.rel (%p838) target = $region48
      $region47: #{tpu_custom_call.1} parent=5 // pred_region
        %s841 = ssub.s32 %s14, 2
        // Predicated region
        $region49: #{tpu_custom_call.1} parent=47 // pred_check
          %p842 = pneg %p153
        $region50: #{tpu_custom_call.1} parent=47 // pred_check_branch
          %844 = sbr.rel (%p842) target = $region52
        $region51: #{tpu_custom_call.1} parent=47 // pred_region
          %s845 = sand.u32 %s138, 1
          %s846 = scalar_lea.sflag [#allocation4], %s845
          %s847 = sand.u32 %s138, 1
          %s848 = smul.addr %s847, 8
          %s849 = scalar_lea.vmem [#allocation3], %s848
          %851 = dma.done %s846, 128
        $region52: #{tpu_custom_call.1} parent=47 // pred_fallthru
          _
      $region48: #{tpu_custom_call.1} parent=5 // pred_fallthru
        _
    $region6: #{tpu_custom_call.1} parent=1 // loop_footer
      %s18 = sadd.s32 1, %s14
    $region7: #{tpu_custom_call.1} parent=1 // loop_footer_branch
      %13 = sbr.rel target = $region3
    $region8: #{tpu_custom_call.1} parent=1 // loop_exit
      _
    %852 = vsyncpa [#allocation4], 1
    %s853 = scalar_lea.sflag [#allocation4], 1
    %854 = vsyncpa %s853, 1

</llo_original>
